<compile_context>
chip_gen: v6e
topology: v6e:2x2x1
jax: 0.10.0
libtpu: 0.0.40
codegen_flags: <defaults>
</compile_context>

<pallas_src>
import math

import numpy as np
import jax
import jax.numpy as jnp
from jax.experimental import pallas as pl
from jax.experimental.pallas import tpu as pltpu


# ----------------------------------------------------------------------------
# Filters (deterministic: pywt 'haar' dec_lo / dec_hi, kernel_size == 2).
# ----------------------------------------------------------------------------
def haar_2x2_filters():
    s = 1.0 / math.sqrt(2.0)
    filt_low = np.array([s, s], dtype=np.float32)    # pywt haar dec_lo
    filt_high = np.array([-s, s], dtype=np.float32)  # pywt haar dec_hi
    return (np.outer(filt_low, filt_low), np.outer(filt_low, filt_high),
            np.outer(filt_high, filt_low), np.outer(filt_high, filt_high))


# ----------------------------------------------------------------------------
# Kernel bodies.
# ----------------------------------------------------------------------------
def _butterfly(ll, lh, hl, hh):
    """Haar synthesis butterfly: 12 VPU ops instead of 4 x (4 mul + 3 add).

    Returns the four output polyphase components:
      oee = out[2i  , 2j  ]   oeo = out[2i  , 2j+1]
      ooe = out[2i+1, 2j  ]   ooo = out[2i+1, 2j+1]
    (equal to sum_band f_band[1-a, 1-c] * band with the haar 2x2 filters).
    """
    p = ll + hl
    q = ll - hl
    r = lh + hh
    t = lh - hh
    oee = 0.5 * (p + r)
    oeo = 0.5 * (p - r)
    ooe = 0.5 * (q + t)
    ooo = 0.5 * (q - t)
    return oee, oeo, ooe, ooo


def _phases_kernel(ll_ref, lh_ref, hl_ref, hh_ref,
                   oee_ref, oeo_ref, ooe_ref, ooo_ref):
    """Safe path: four polyphase planes (pure elementwise, any 2D layout)."""
    f32 = jnp.float32
    oee, oeo, ooe, ooo = _butterfly(
        ll_ref[...].astype(f32), lh_ref[...].astype(f32),
        hl_ref[...].astype(f32), hh_ref[...].astype(f32))
    oee_ref[...] = oee.astype(oee_ref.dtype)
    oeo_ref[...] = oeo.astype(oeo_ref.dtype)
    ooe_ref[...] = ooe.astype(ooe_ref.dtype)
    ooo_ref[...] = ooo.astype(ooo_ref.dtype)


def _fused_kernel(ll_ref, lh_ref, hl_ref, hh_ref, out_ref):
    """Fused path: inputs are (TR, w) row blocks (rows = flattened N*C*h);
    output block is (TR, 4w) = [even output row (2w) | odd output row (2w)],
    i.e. the pixel-shuffle interleave is done in-kernel and the wrapper-side
    reshape to (N, C, 2h, 2w) is a free contiguous merge."""
    f32 = jnp.float32
    oee, oeo, ooe, ooo = _butterfly(
        ll_ref[...].astype(f32), lh_ref[...].astype(f32),
        hl_ref[...].astype(f32), hh_ref[...].astype(f32))
    tr, w = ll_ref.shape
    # Lane interleave: even[2j] = oee[j], even[2j+1] = oeo[j] (XLU work).
    even = jnp.stack([oee, oeo], axis=-1).reshape(tr, 2 * w)
    odd = jnp.stack([ooe, ooo], axis=-1).reshape(tr, 2 * w)
    out_ref[:, : 2 * w] = even.astype(out_ref.dtype)
    out_ref[:, 2 * w:] = odd.astype(out_ref.dtype)


# ----------------------------------------------------------------------------
# Block-size selection (memory-bound op: big, lane-dense, VMEM-budgeted tiles).
# ----------------------------------------------------------------------------
_VMEM_BUDGET = 16 * 1024 * 1024  # double-buffered live working-set target


def _divisors(n):
    ds = set()
    d = 1
    while d * d <= n:
        if n % d == 0:
            ds.add(d)
            ds.add(n // d)
        d += 1
    return sorted(ds)


def _choose_block_rows(rows, bytes_per_row_all_arrays):
    """Pick a row-block size: a divisor of `rows` that is a multiple of 8 (or
    rows itself, keeping the block shape legal), keeps the double-buffered
    VMEM footprint under budget (fits default scoped VMEM on v5e/v6e/v7x),
    and leaves >= 2 grid steps when possible (both v7x TensorCores get work).
    """
    max_rows = max(1, _VMEM_BUDGET // (2 * bytes_per_row_all_arrays))
    legal = [d for d in _divisors(rows) if d % 8 == 0 or d == rows]
    multi = [d for d in legal if rows // d >= 2] or legal
    fitting = [d for d in multi if d <= max_rows] or [min(multi)]
    return max(fitting)


# ----------------------------------------------------------------------------
# Pallas wrappers.
# ----------------------------------------------------------------------------
def _idwt2d_fused(LL, LH, HL, HH):
    N, C, h, w = LL.shape
    B = N * C
    R = B * h
    dtype = LL.dtype
    item = dtype.itemsize
    planes = [x.reshape(R, w) for x in (LL, LH, HL, HH)]   # free merge

    # Per grid step: 4 input blocks (tr*w) + 1 output block (tr*4w).
    tr = _choose_block_rows(R, 8 * w * item)
    grid = (R // tr,)
    in_spec = pl.BlockSpec((tr, w), lambda i: (i, 0))
    out_spec = pl.BlockSpec((tr, 4 * w), lambda i: (i, 0))

    out = pl.pallas_call(
        _fused_kernel,
        grid=grid,
        in_specs=[in_spec, in_spec, in_spec, in_spec],
        out_specs=out_spec,
        out_shape=jax.ShapeDtypeStruct((R, 4 * w), dtype),
        compiler_params=pltpu.CompilerParams(
            dimension_semantics=("parallel",)),
        cost_estimate=pl.CostEstimate(
            flops=12 * B * h * w,
            transcendentals=0,
            bytes_accessed=8 * B * h * w * item),
    )(*planes)
    # Row r = (b, i); columns = [even row 2i | odd row 2i+1]; merging to
    # (N, C, 2h, 2w) is a contiguous (free) reshape — no extra HBM pass.
    return out.reshape(N, C, 2 * h, 2 * w)


def _idwt2d_unfused(LL, LH, HL, HH):
    """Fallback path: polyphase planes from Pallas (lane-dense flattened
    layout), pixel-shuffle interleave done by XLA afterwards."""
    N, C, h, w = LL.shape
    B = N * C
    T = B * h * w
    dtype = LL.dtype
    item = dtype.itemsize

    # Elementwise op: flatten to a lane-dense 2D layout.
    L = None
    for cand in (2048, 1024, 512, 256, 128):
        if T % cand == 0:
            L = cand
            break
    if L is None:
        rows, L = B, h * w           # full-dim block is always legal
    else:
        rows = T // L
    planes = [x.reshape(rows, L) for x in (LL, LH, HL, HH)]

    tr = _choose_block_rows(rows, 8 * L * item)
    grid = (rows // tr,)
    spec = pl.BlockSpec((tr, L), lambda i: (i, 0))
    sds = jax.ShapeDtypeStruct((rows, L), dtype)

    oee, oeo, ooe, ooo = pl.pallas_call(
        _phases_kernel,
        grid=grid,
        in_specs=[spec, spec, spec, spec],
        out_specs=[spec, spec, spec, spec],
        out_shape=(sds, sds, sds, sds),
        compiler_params=pltpu.CompilerParams(
            dimension_semantics=("parallel",)),
        cost_estimate=pl.CostEstimate(
            flops=12 * T,
            transcendentals=0,
            bytes_accessed=8 * T * item),
    )(*planes)

    oee, oeo, ooe, ooo = (x.reshape(B, h, w) for x in (oee, oeo, ooe, ooo))
    even = jnp.stack([oee, oeo], axis=-1).reshape(B, h, 2 * w)
    odd = jnp.stack([ooe, ooo], axis=-1).reshape(B, h, 2 * w)
    out = jnp.stack([even, odd], axis=2).reshape(B, 2 * h, 2 * w)
    return out.reshape(N, C, 2 * h, 2 * w)


_idwt2d_fused_jit = jax.jit(_idwt2d_fused)
_idwt2d_unfused_jit = jax.jit(_idwt2d_unfused)


class IDWT2DPallas:
    """Pallas-TPU port of IDWT_2D with the default config: wavename='haar',
    stride=2, pad_type='reflect', out_channels=in_channels,
    groups=in_channels, trainable=False.  NCHW layout, (N, C) collapsed to a
    single batch axis since the depthwise filter is identical per channel."""

    def __init__(self, in_channels=1, wavename="haar"):
        # TODO(synk): non-haar wavelets (kernel_size > 2) / trainable filters
        # need the general zero-insert upsample + pad + KxK depthwise path.
        assert wavename == "haar"
        self.in_channels = in_channels
        self._use_fused = {}  # (shape, dtype) -> bool

    def __call__(self, LL, LH, HL, HH):
        assert LL.ndim == 4
        assert LL.shape == LH.shape == HL.shape == HH.shape
        assert LL.shape[1] == self.in_channels
        key = (tuple(LL.shape), str(jnp.dtype(LL.dtype)))
        use_fused = self._use_fused.get(key)
        if use_fused is None:
            tracer_cls = getattr(jax.core, "Tracer", ())
            if isinstance(LL, tracer_cls):
                use_fused = False          # cannot probe under tracing
            else:
                use_fused, out = self._probe(LL, LH, HL, HH)
                self._use_fused[key] = use_fused
                return out
        if use_fused:
            return _idwt2d_fused_jit(LL, LH, HL, HH)
        return _idwt2d_unfused_jit(LL, LH, HL, HH)

    @staticmethod
    def _probe(LL, LH, HL, HH):
        """One-time (per shape/dtype) probe: the fused kernel relies on an
        in-kernel lane-interleave reshape whose Mosaic support can vary by
        release; adopt it only if it compiles AND matches the safe path."""
        safe = jax.block_until_ready(_idwt2d_unfused_jit(LL, LH, HL, HH))
        try:
            fused = jax.block_until_ready(_idwt2d_fused_jit(LL, LH, HL, HH))
            if bool(jnp.allclose(fused, safe, rtol=1e-5, atol=1e-5)):
                return True, fused
        except Exception:
            pass
        return False, safe


# ----------------------------------------------------------------------------
# Literal reference (torch-op path, vectorized): conv_transpose2d with
# [[1,0],[0,0]] (zero-insert upsample, stride 2) -> reflect pad [1,0,1,0] ->
# depthwise 2x2 conv (cross-correlation), summed over the four sub-bands.
# ----------------------------------------------------------------------------
def idwt2d_reference(LL, LH, HL, HH):
    f_ll, f_lh, f_hl, f_hh = haar_2x2_filters()
    N, C, h, w = LL.shape
    out = np.zeros((N, C, 2 * h, 2 * w), dtype=np.float32)
    for x, f in ((LL, f_ll), (LH, f_lh), (HL, f_hl), (HH, f_hh)):
        up = np.zeros((N, C, 2 * h, 2 * w), dtype=np.float32)
        up[:, :, 0::2, 0::2] = x
        p = np.pad(up, ((0, 0), (0, 0), (1, 0), (1, 0)), mode="reflect")
        for u in range(2):
            for v in range(2):
                out += f[u, v] * p[:, :, u:u + 2 * h, v:v + 2 * w]
    return out


if __name__ == "__main__":
    key = jax.random.PRNGKey(0)
    k1, k2, k3, k4 = jax.random.split(key, 4)
    N, C, h, w = 2, 4, 64, 64
    LL = jax.random.normal(k1, (N, C, h, w), jnp.float32)
    LH = jax.random.normal(k2, (N, C, h, w), jnp.float32)
    HL = jax.random.normal(k3, (N, C, h, w), jnp.float32)
    HH = jax.random.normal(k4, (N, C, h, w), jnp.float32)

    idwt = IDWT2DPallas(in_channels=C)
    out = jax.block_until_ready(idwt(LL, LH, HL, HH))
    assert out.shape == (N, C, 2 * h, 2 * w)
    assert out.dtype == jnp.float32

    ref = idwt2d_reference(np.asarray(LL), np.asarray(LH),
                           np.asarray(HL), np.asarray(HH))
    np.testing.assert_allclose(np.asarray(out), ref, rtol=1e-5, atol=1e-5)
    print("KERNEL_OK")
</pallas_src>

<mosaic_0001>
module attributes {stable_mosaic.version = 11 : i64} {
  func.func @_phases_kernel(%arg0: i32, %arg1: memref<8x2048xf32, #tpu.memory_space<vmem>>, %arg2: memref<8x2048xf32, #tpu.memory_space<vmem>>, %arg3: memref<8x2048xf32, #tpu.memory_space<vmem>>, %arg4: memref<8x2048xf32, #tpu.memory_space<vmem>>, %arg5: memref<8x2048xf32, #tpu.memory_space<vmem>>, %arg6: memref<8x2048xf32, #tpu.memory_space<vmem>>, %arg7: memref<8x2048xf32, #tpu.memory_space<vmem>>, %arg8: memref<8x2048xf32, #tpu.memory_space<vmem>>) attributes {dimension_semantics = [#tpu.dimension_semantics<parallel>], iteration_bounds = array<i64: 2>, scalar_prefetch = 0 : i64, scratch_operands = 0 : i64, tpu.core_type = #tpu.core_type<tc>, window_params = [{transform_indices = @transform_0, window_bounds = array<i64: 8, 2048>}, {transform_indices = @transform_1, window_bounds = array<i64: 8, 2048>}, {transform_indices = @transform_2, window_bounds = array<i64: 8, 2048>}, {transform_indices = @transform_3, window_bounds = array<i64: 8, 2048>}, {transform_indices = @transform_4, window_bounds = array<i64: 8, 2048>}, {transform_indices = @transform_5, window_bounds = array<i64: 8, 2048>}, {transform_indices = @transform_6, window_bounds = array<i64: 8, 2048>}, {transform_indices = @transform_7, window_bounds = array<i64: 8, 2048>}]} {
    %c0 = arith.constant 0 : index
    %c0_0 = arith.constant 0 : index
    %0 = vector.load %arg1[%c0, %c0_0] : memref<8x2048xf32, #tpu.memory_space<vmem>>, vector<8x2048xf32>
    %c0_1 = arith.constant 0 : index
    %c0_2 = arith.constant 0 : index
    %1 = vector.load %arg2[%c0_1, %c0_2] : memref<8x2048xf32, #tpu.memory_space<vmem>>, vector<8x2048xf32>
    %c0_3 = arith.constant 0 : index
    %c0_4 = arith.constant 0 : index
    %2 = vector.load %arg3[%c0_3, %c0_4] : memref<8x2048xf32, #tpu.memory_space<vmem>>, vector<8x2048xf32>
    %c0_5 = arith.constant 0 : index
    %c0_6 = arith.constant 0 : index
    %3 = vector.load %arg4[%c0_5, %c0_6] : memref<8x2048xf32, #tpu.memory_space<vmem>>, vector<8x2048xf32>
    %4 = arith.addf %0, %2 : vector<8x2048xf32>
    %5 = arith.subf %0, %2 : vector<8x2048xf32>
    %6 = arith.addf %1, %3 : vector<8x2048xf32>
    %7 = arith.subf %1, %3 : vector<8x2048xf32>
    %8 = arith.addf %4, %6 : vector<8x2048xf32>
    %cst = arith.constant 5.000000e-01 : f32
    %9 = vector.broadcast %cst : f32 to vector<8x2048xf32>
    %10 = arith.mulf %9, %8 : vector<8x2048xf32>
    %11 = arith.subf %4, %6 : vector<8x2048xf32>
    %cst_7 = arith.constant 5.000000e-01 : f32
    %12 = vector.broadcast %cst_7 : f32 to vector<8x2048xf32>
    %13 = arith.mulf %12, %11 : vector<8x2048xf32>
    %14 = arith.addf %5, %7 : vector<8x2048xf32>
    %cst_8 = arith.constant 5.000000e-01 : f32
    %15 = vector.broadcast %cst_8 : f32 to vector<8x2048xf32>
    %16 = arith.mulf %15, %14 : vector<8x2048xf32>
    %17 = arith.subf %5, %7 : vector<8x2048xf32>
    %cst_9 = arith.constant 5.000000e-01 : f32
    %18 = vector.broadcast %cst_9 : f32 to vector<8x2048xf32>
    %19 = arith.mulf %18, %17 : vector<8x2048xf32>
    %c0_10 = arith.constant 0 : index
    %c0_11 = arith.constant 0 : index
    %20 = vector.load %arg5[%c0_10, %c0_11] : memref<8x2048xf32, #tpu.memory_space<vmem>>, vector<8x2048xf32>
    tpu.vector_store %arg5[%c0_10, %c0_11], %10 {strides = array<i32>} : memref<8x2048xf32, #tpu.memory_space<vmem>>, vector<8x2048xf32>,
    %c0_12 = arith.constant 0 : index
    %c0_13 = arith.constant 0 : index
    %21 = vector.load %arg6[%c0_12, %c0_13] : memref<8x2048xf32, #tpu.memory_space<vmem>>, vector<8x2048xf32>
    tpu.vector_store %arg6[%c0_12, %c0_13], %13 {strides = array<i32>} : memref<8x2048xf32, #tpu.memory_space<vmem>>, vector<8x2048xf32>,
    %c0_14 = arith.constant 0 : index
    %c0_15 = arith.constant 0 : index
    %22 = vector.load %arg7[%c0_14, %c0_15] : memref<8x2048xf32, #tpu.memory_space<vmem>>, vector<8x2048xf32>
    tpu.vector_store %arg7[%c0_14, %c0_15], %16 {strides = array<i32>} : memref<8x2048xf32, #tpu.memory_space<vmem>>, vector<8x2048xf32>,
    %c0_16 = arith.constant 0 : index
    %c0_17 = arith.constant 0 : index
    %23 = vector.load %arg8[%c0_16, %c0_17] : memref<8x2048xf32, #tpu.memory_space<vmem>>, vector<8x2048xf32>
    tpu.vector_store %arg8[%c0_16, %c0_17], %19 {strides = array<i32>} : memref<8x2048xf32, #tpu.memory_space<vmem>>, vector<8x2048xf32>,
    return
  }
  func.func @transform_0(%arg0: i32) -> (i32, i32) {
    %c0_i32 = arith.constant 0 : i32
    %c0_i32_0 = arith.constant 0 : i32
    return %arg0, %c0_i32 : i32, i32
  }
  func.func @transform_1(%arg0: i32) -> (i32, i32) {
    %c0_i32 = arith.constant 0 : i32
    %c0_i32_0 = arith.constant 0 : i32
    return %arg0, %c0_i32 : i32, i32
  }
  func.func @transform_2(%arg0: i32) -> (i32, i32) {
    %c0_i32 = arith.constant 0 : i32
    %c0_i32_0 = arith.constant 0 : i32
    return %arg0, %c0_i32 : i32, i32
  }
  func.func @transform_3(%arg0: i32) -> (i32, i32) {
    %c0_i32 = arith.constant 0 : i32
    %c0_i32_0 = arith.constant 0 : i32
    return %arg0, %c0_i32 : i32, i32
  }
  func.func @transform_4(%arg0: i32) -> (i32, i32) {
    %c0_i32 = arith.constant 0 : i32
    %c0_i32_0 = arith.constant 0 : i32
    return %arg0, %c0_i32 : i32, i32
  }
  func.func @transform_5(%arg0: i32) -> (i32, i32) {
    %c0_i32 = arith.constant 0 : i32
    %c0_i32_0 = arith.constant 0 : i32
    return %arg0, %c0_i32 : i32, i32
  }
  func.func @transform_6(%arg0: i32) -> (i32, i32) {
    %c0_i32 = arith.constant 0 : i32
    %c0_i32_0 = arith.constant 0 : i32
    return %arg0, %c0_i32 : i32, i32
  }
  func.func @transform_7(%arg0: i32) -> (i32, i32) {
    %c0_i32 = arith.constant 0 : i32
    %c0_i32_0 = arith.constant 0 : i32
    return %arg0, %c0_i32 : i32, i32
  }
}

</mosaic_0001>

<llo_original>
// kernel: _idwt2d_unfused.1
$region0: #{_idwt2d_unfused.1}
  #allocation0 [shape = 'u32[]', space=smem, size = 0x4, offset = 0x4, fixed_abs, tag = 'smem constant byte address 0x4 - core index']
  #allocation1 [shape = 'u32[144,128]{1,0:T(1,128)}', space=vmem, size = 0x12000, scoped, tag = 'internal scratch']
  %s0 = inlined_call_operand.vmem [shape: f32[16,2048], index: 0, kind: input, shape index: {}]
  %s1 = inlined_call_operand.vmem [shape: f32[16,2048], index: 1, kind: input, shape index: {}]
  %s2 = inlined_call_operand.vmem [shape: f32[16,2048], index: 2, kind: input, shape index: {}]
  %s3 = inlined_call_operand.vmem [shape: f32[16,2048], index: 3, kind: input, shape index: {}]
  %s4 = inlined_call_operand.vmem [shape: f32[16,2048], index: 4, kind: output, shape index: {0}]
  %s5 = inlined_call_operand.vmem [shape: f32[16,2048], index: 5, kind: output, shape index: {1}]
  %s6 = inlined_call_operand.vmem [shape: f32[16,2048], index: 6, kind: output, shape index: {2}]
  %s7 = inlined_call_operand.vmem [shape: f32[16,2048], index: 7, kind: output, shape index: {3}]
  %8 = xla_tuple %s4, %s5, %s6, %s7
  %s9 = sld [smem:[#allocation0]]
  $region73: #{_idwt2d_unfused.1} parent=0
    _
  %s11 = ssub.s32 1, %s9
  %s12 = scalar_select 0, %s11, %s9
  loop: start=0, step=1, limit=4
  $region2: #{_idwt2d_unfused.1} parent=0 // loop_pre_header
    _
  $region3: #{_idwt2d_unfused.1} parent=0 // loop_header
    %s14 = sphi 0, %s18
    %p15 = scmp.ge.s32.totalorder %s14, 4
    %s24 = sphi 0, %s26
    %s27 = sphi 0, %s24
    %s28 = sphi 0, %s27
    %s44 = sphi 0, %s28
    %s50 = sphi 0, %s52
    %s53 = sphi 0, %s50
    %s54 = sphi 0, %s53
    %s70 = sphi 0, %s54
    %s76 = sphi 0, %s78
    %s79 = sphi 0, %s76
    %s80 = sphi 0, %s79
    %s96 = sphi 0, %s80
    %s102 = sphi 0, %s104
    %s105 = sphi 0, %s102
    %s106 = sphi 0, %s105
    %s122 = sphi 0, %s106
    %s128 = sphi 0, %s130
    %s131 = sphi 0, %s128
    %s132 = sphi 0, %s131
    %s148 = sphi 0, %s132
    %s154 = sphi 0, %s156
    %s157 = sphi 0, %s154
    %s158 = sphi 0, %s157
    %s174 = sphi 0, %s158
    %s180 = sphi 0, %s182
    %s183 = sphi 0, %s180
    %s184 = sphi 0, %s183
    %s200 = sphi 0, %s184
    %s206 = sphi 0, %s208
    %s209 = sphi 0, %s206
    %s210 = sphi 0, %s209
    %s226 = sphi 0, %s210
  $region4: #{_idwt2d_unfused.1} parent=0 // loop_header_branch
    %17 = sbr.rel (%p15) target = $region8
  $region5: #{_idwt2d_unfused.1} parent=0 // loop_body
    %s19 = ssub.s32 %s14, 1
    %s20 = ssub.s32 %s14, 2
    %s21 = sadd.s32 %s14, 1
    %s22 = ssub.s32 %s14, %s21
    %p23 = scmp.eq.s32.totalorder %s22, 0
    %s25 = sadd.s32 %s24, 1
    %s26 = scalar_select %p23, %s24, %s25
    %p29 = pneg %p23
    %p30 = scmp.eq.s32.totalorder %s14, 1
    %p31 = por %p29, %p30
    %p32 = scmp.ne.s32.totalorder %s24, %s27
    %p33 = scmp.eq.s32.totalorder %s14, 0
    %p34 = por %p32, %p33
    %p35 = scmp.ne.s32.totalorder %s24, %s27
    %p36 = scmp.eq.s32.totalorder %s19, 1
    %p37 = por %p35, %p36
    %p38 = scmp.ne.s32.totalorder %s27, %s28
    %p39 = scmp.eq.s32.totalorder %s19, 0
    %p40 = por %p38, %p39
    %p41 = scmp.ne.s32.totalorder %s27, %s28
    %p42 = scmp.eq.s32.totalorder %s20, 1
    %p43 = por %p41, %p42
    %p45 = scmp.ne.s32.totalorder %s28, %s44
    %p46 = scmp.eq.s32.totalorder %s20, 0
    %p47 = por %p45, %p46
    %s48 = ssub.s32 %s14, %s21
    %p49 = scmp.eq.s32.totalorder %s48, 0
    %s51 = sadd.s32 %s50, 1
    %s52 = scalar_select %p49, %s50, %s51
    %p55 = pneg %p49
    %p56 = scmp.eq.s32.totalorder %s14, 1
    %p57 = por %p55, %p56
    %p58 = scmp.ne.s32.totalorder %s50, %s53
    %p59 = scmp.eq.s32.totalorder %s14, 0
    %p60 = por %p58, %p59
    %p61 = scmp.ne.s32.totalorder %s50, %s53
    %p62 = scmp.eq.s32.totalorder %s19, 1
    %p63 = por %p61, %p62
    %p64 = scmp.ne.s32.totalorder %s53, %s54
    %p65 = scmp.eq.s32.totalorder %s19, 0
    %p66 = por %p64, %p65
    %p67 = scmp.ne.s32.totalorder %s53, %s54
    %p68 = scmp.eq.s32.totalorder %s20, 1
    %p69 = por %p67, %p68
    %p71 = scmp.ne.s32.totalorder %s54, %s70
    %p72 = scmp.eq.s32.totalorder %s20, 0
    %p73 = por %p71, %p72
    %s74 = ssub.s32 %s14, %s21
    %p75 = scmp.eq.s32.totalorder %s74, 0
    %s77 = sadd.s32 %s76, 1
    %s78 = scalar_select %p75, %s76, %s77
    %p81 = pneg %p75
    %p82 = scmp.eq.s32.totalorder %s14, 1
    %p83 = por %p81, %p82
    %p84 = scmp.ne.s32.totalorder %s76, %s79
    %p85 = scmp.eq.s32.totalorder %s14, 0
    %p86 = por %p84, %p85
    %p87 = scmp.ne.s32.totalorder %s76, %s79
    %p88 = scmp.eq.s32.totalorder %s19, 1
    %p89 = por %p87, %p88
    %p90 = scmp.ne.s32.totalorder %s79, %s80
    %p91 = scmp.eq.s32.totalorder %s19, 0
    %p92 = por %p90, %p91
    %p93 = scmp.ne.s32.totalorder %s79, %s80
    %p94 = scmp.eq.s32.totalorder %s20, 1
    %p95 = por %p93, %p94
    %p97 = scmp.ne.s32.totalorder %s80, %s96
    %p98 = scmp.eq.s32.totalorder %s20, 0
    %p99 = por %p97, %p98
    %s100 = ssub.s32 %s14, %s21
    %p101 = scmp.eq.s32.totalorder %s100, 0
    %s103 = sadd.s32 %s102, 1
    %s104 = scalar_select %p101, %s102, %s103
    %p107 = pneg %p101
    %p108 = scmp.eq.s32.totalorder %s14, 1
    %p109 = por %p107, %p108
    %p110 = scmp.ne.s32.totalorder %s102, %s105
    %p111 = scmp.eq.s32.totalorder %s14, 0
    %p112 = por %p110, %p111
    %p113 = scmp.ne.s32.totalorder %s102, %s105
    %p114 = scmp.eq.s32.totalorder %s19, 1
    %p115 = por %p113, %p114
    %p116 = scmp.ne.s32.totalorder %s105, %s106
    %p117 = scmp.eq.s32.totalorder %s19, 0
    %p118 = por %p116, %p117
    %p119 = scmp.ne.s32.totalorder %s105, %s106
    %p120 = scmp.eq.s32.totalorder %s20, 1
    %p121 = por %p119, %p120
    %p123 = scmp.ne.s32.totalorder %s106, %s122
    %p124 = scmp.eq.s32.totalorder %s20, 0
    %p125 = por %p123, %p124
    %s126 = ssub.s32 %s14, %s21
    %p127 = scmp.eq.s32.totalorder %s126, 0
    %s129 = sadd.s32 %s128, 1
    %s130 = scalar_select %p127, %s128, %s129
    %p133 = pneg %p127
    %p134 = scmp.eq.s32.totalorder %s14, 1
    %p135 = por %p133, %p134
    %p136 = scmp.ne.s32.totalorder %s128, %s131
    %p137 = scmp.eq.s32.totalorder %s14, 0
    %p138 = por %p136, %p137
    %p139 = scmp.ne.s32.totalorder %s128, %s131
    %p140 = scmp.eq.s32.totalorder %s19, 1
    %p141 = por %p139, %p140
    %p142 = scmp.ne.s32.totalorder %s131, %s132
    %p143 = scmp.eq.s32.totalorder %s19, 0
    %p144 = por %p142, %p143
    %p145 = scmp.ne.s32.totalorder %s131, %s132
    %p146 = scmp.eq.s32.totalorder %s20, 1
    %p147 = por %p145, %p146
    %p149 = scmp.ne.s32.totalorder %s132, %s148
    %p150 = scmp.eq.s32.totalorder %s20, 0
    %p151 = por %p149, %p150
    %s152 = ssub.s32 %s14, %s21
    %p153 = scmp.eq.s32.totalorder %s152, 0
    %s155 = sadd.s32 %s154, 1
    %s156 = scalar_select %p153, %s154, %s155
    %p159 = pneg %p153
    %p160 = scmp.eq.s32.totalorder %s14, 1
    %p161 = por %p159, %p160
    %p162 = scmp.ne.s32.totalorder %s154, %s157
    %p163 = scmp.eq.s32.totalorder %s14, 0
    %p164 = por %p162, %p163
    %p165 = scmp.ne.s32.totalorder %s154, %s157
    %p166 = scmp.eq.s32.totalorder %s19, 1
    %p167 = por %p165, %p166
    %p168 = scmp.ne.s32.totalorder %s157, %s158
    %p169 = scmp.eq.s32.totalorder %s19, 0
    %p170 = por %p168, %p169
    %p171 = scmp.ne.s32.totalorder %s157, %s158
    %p172 = scmp.eq.s32.totalorder %s20, 1
    %p173 = por %p171, %p172
    %p175 = scmp.ne.s32.totalorder %s158, %s174
    %p176 = scmp.eq.s32.totalorder %s20, 0
    %p177 = por %p175, %p176
    %s178 = ssub.s32 %s14, %s21
    %p179 = scmp.eq.s32.totalorder %s178, 0
    %s181 = sadd.s32 %s180, 1
    %s182 = scalar_select %p179, %s180, %s181
    %p185 = pneg %p179
    %p186 = scmp.eq.s32.totalorder %s14, 1
    %p187 = por %p185, %p186
    %p188 = scmp.ne.s32.totalorder %s180, %s183
    %p189 = scmp.eq.s32.totalorder %s14, 0
    %p190 = por %p188, %p189
    %p191 = scmp.ne.s32.totalorder %s180, %s183
    %p192 = scmp.eq.s32.totalorder %s19, 1
    %p193 = por %p191, %p192
    %p194 = scmp.ne.s32.totalorder %s183, %s184
    %p195 = scmp.eq.s32.totalorder %s19, 0
    %p196 = por %p194, %p195
    %p197 = scmp.ne.s32.totalorder %s183, %s184
    %p198 = scmp.eq.s32.totalorder %s20, 1
    %p199 = por %p197, %p198
    %p201 = scmp.ne.s32.totalorder %s184, %s200
    %p202 = scmp.eq.s32.totalorder %s20, 0
    %p203 = por %p201, %p202
    %s204 = ssub.s32 %s14, %s21
    %p205 = scmp.eq.s32.totalorder %s204, 0
    %s207 = sadd.s32 %s206, 1
    %s208 = scalar_select %p205, %s206, %s207
    %p211 = pneg %p205
    %p212 = scmp.eq.s32.totalorder %s14, 1
    %p213 = por %p211, %p212
    %p214 = scmp.ne.s32.totalorder %s206, %s209
    %p215 = scmp.eq.s32.totalorder %s14, 0
    %p216 = por %p214, %p215
    %p217 = scmp.ne.s32.totalorder %s206, %s209
    %p218 = scmp.eq.s32.totalorder %s19, 1
    %p219 = por %p217, %p218
    %p220 = scmp.ne.s32.totalorder %s209, %s210
    %p221 = scmp.eq.s32.totalorder %s19, 0
    %p222 = por %p220, %p221
    %p223 = scmp.ne.s32.totalorder %s209, %s210
    %p224 = scmp.eq.s32.totalorder %s20, 1
    %p225 = por %p223, %p224
    %p227 = scmp.ne.s32.totalorder %s210, %s226
    %p228 = scmp.eq.s32.totalorder %s20, 0
    %p229 = por %p227, %p228
    %p230 = scmp.le.s32.totalorder 1, %s14
    %p231 = scmp.lt.s32.totalorder %s14, 3
    %p232 = pnand %p230, %p231
    %p233 = pneg %p232
    // Predicated region
    $region9: #{_idwt2d_unfused.1} parent=5 // pred_check
      _
    $region10: #{_idwt2d_unfused.1} parent=5 // pred_check_branch
      %235 = sbr.rel (%p232) target = $region12
    $region11: #{_idwt2d_unfused.1} parent=5 // pred_region
      %s236 = ssub.s32 %s14, 1
    $region12: #{_idwt2d_unfused.1} parent=5 // pred_fallthru
      _
    %p237 = scmp.lt.s32.totalorder %s14, 2
    // Predicated region
    $region13: #{_idwt2d_unfused.1} parent=5 // pred_check
      %p238 = pneg %p237
    $region14: #{_idwt2d_unfused.1} parent=5 // pred_check_branch
      %240 = sbr.rel (%p238) target = $region16
    $region15: #{_idwt2d_unfused.1} parent=5 // pred_region
      // Predicated region
      $region17: #{_idwt2d_unfused.1} parent=15 // pred_check
        %p241 = pneg %p34
      $region18: #{_idwt2d_unfused.1} parent=15 // pred_check_branch
        %243 = sbr.rel (%p241) target = $region20
      $region19: #{_idwt2d_unfused.1} parent=15 // pred_region
        %p244 = scmp.lt.s32.totalorder %s14, 1
        %s245 = scalar_select %p244, %s14, 1
        %s246 = smul.addr %s245, 16
        %s247 = smul.addr %s246, 8
        %s248 = scalar_lea.vmem %s0, %s247
      $region20: #{_idwt2d_unfused.1} parent=15 // pred_fallthru
        _
      // Predicated region
      $region21: #{_idwt2d_unfused.1} parent=15 // pred_check
        %p249 = pneg %p60
      $region22: #{_idwt2d_unfused.1} parent=15 // pred_check_branch
        %251 = sbr.rel (%p249) target = $region24
      $region23: #{_idwt2d_unfused.1} parent=15 // pred_region
        %p252 = scmp.lt.s32.totalorder %s14, 1
        %s253 = scalar_select %p252, %s14, 1
        %s254 = smul.addr %s253, 16
        %s255 = smul.addr %s254, 8
        %s256 = scalar_lea.vmem %s1, %s255
      $region24: #{_idwt2d_unfused.1} parent=15 // pred_fallthru
        _
      // Predicated region
      $region25: #{_idwt2d_unfused.1} parent=15 // pred_check
        %p257 = pneg %p86
      $region26: #{_idwt2d_unfused.1} parent=15 // pred_check_branch
        %259 = sbr.rel (%p257) target = $region28
      $region27: #{_idwt2d_unfused.1} parent=15 // pred_region
        %p260 = scmp.lt.s32.totalorder %s14, 1
        %s261 = scalar_select %p260, %s14, 1
        %s262 = smul.addr %s261, 16
        %s263 = smul.addr %s262, 8
        %s264 = scalar_lea.vmem %s2, %s263
      $region28: #{_idwt2d_unfused.1} parent=15 // pred_fallthru
        _
      // Predicated region
      $region29: #{_idwt2d_unfused.1} parent=15 // pred_check
        %p265 = pneg %p112
      $region30: #{_idwt2d_unfused.1} parent=15 // pred_check_branch
        %267 = sbr.rel (%p265) target = $region32
      $region31: #{_idwt2d_unfused.1} parent=15 // pred_region
        %p268 = scmp.lt.s32.totalorder %s14, 1
        %s269 = scalar_select %p268, %s14, 1
        %s270 = smul.addr %s269, 16
        %s271 = smul.addr %s270, 8
        %s272 = scalar_lea.vmem %s3, %s271
      $region32: #{_idwt2d_unfused.1} parent=15 // pred_fallthru
        _
    $region16: #{_idwt2d_unfused.1} parent=5 // pred_fallthru
      _
    %p273 = scmp.le.s32.totalorder 1, %s14
    %p274 = scmp.lt.s32.totalorder %s14, 3
    %p275 = pnand %p273, %p274
    %p276 = pneg %p275
    // Predicated region
    $region33: #{_idwt2d_unfused.1} parent=5 // pred_check
      _
    $region34: #{_idwt2d_unfused.1} parent=5 // pred_check_branch
      %278 = sbr.rel (%p275) target = $region36
    $region35: #{_idwt2d_unfused.1} parent=5 // pred_region
      %s279 = ssub.s32 %s14, 1
      %p280 = scmp.lt.s32.totalorder %s19, 1
      %s281 = scalar_select %p280, %s19, 1
      %s282 = smul.addr %s281, 16
      %s283 = smul.addr %s282, 8
      %s284 = scalar_lea.vmem %s0, %s283
      %p285 = pneg %p40
      %p286 = pneg %p37
      %p287 = scmp.lt.s32.totalorder %s19, 1
      %s288 = scalar_select %p287, %s19, 1
      %s289 = smul.addr %s288, 16
      %s290 = smul.addr %s289, 8
      %s291 = scalar_lea.vmem %s1, %s290
      %p292 = pneg %p66
      %p293 = pneg %p63
      %p294 = scmp.lt.s32.totalorder %s19, 1
      %s295 = scalar_select %p294, %s19, 1
      %s296 = smul.addr %s295, 16
      %s297 = smul.addr %s296, 8
      %s298 = scalar_lea.vmem %s2, %s297
      %p299 = pneg %p92
      %p300 = pneg %p89
      %p301 = scmp.lt.s32.totalorder %s19, 1
      %s302 = scalar_select %p301, %s19, 1
      %s303 = smul.addr %s302, 16
      %s304 = smul.addr %s303, 8
      %s305 = scalar_lea.vmem %s3, %s304
      %p306 = pneg %p118
      %p307 = pneg %p115
      %p308 = pneg %p144
      %p309 = pneg %p141
      %p310 = scmp.lt.s32.totalorder %s19, 1
      %s311 = scalar_select %p310, %s19, 1
      %s312 = smul.addr %s311, 16
      %s313 = smul.addr %s312, 8
      %s314 = scalar_lea.vmem %s4, %s313
      %p315 = pneg %p170
      %p316 = pneg %p167
      %p317 = scmp.lt.s32.totalorder %s19, 1
      %s318 = scalar_select %p317, %s19, 1
      %s319 = smul.addr %s318, 16
      %s320 = smul.addr %s319, 8
      %s321 = scalar_lea.vmem %s5, %s320
      %p322 = pneg %p196
      %p323 = pneg %p193
      %p324 = scmp.lt.s32.totalorder %s19, 1
      %s325 = scalar_select %p324, %s19, 1
      %s326 = smul.addr %s325, 16
      %s327 = smul.addr %s326, 8
      %s328 = scalar_lea.vmem %s6, %s327
      %p329 = pneg %p222
      %p330 = pneg %p219
      %p331 = scmp.lt.s32.totalorder %s19, 1
      %s332 = scalar_select %p331, %s19, 1
      %s333 = smul.addr %s332, 16
      %s334 = smul.addr %s333, 8
      %s335 = scalar_lea.vmem %s7, %s334
      %p336 = scmp.lt.s32.totalorder %s19, 1
      %s337 = scalar_select %p336, %s19, 1
      %s338 = smul.addr %s337, 16
      %s339 = smul.addr %s338, 8
      %s340 = scalar_lea.vmem %s0, %s339
      %p341 = scmp.lt.s32.totalorder %s19, 1
      %s342 = scalar_select %p341, %s19, 1
      %s343 = smul.addr %s342, 16
      %s344 = smul.addr %s343, 8
      %s345 = scalar_lea.vmem %s1, %s344
      %p346 = scmp.lt.s32.totalorder %s19, 1
      %s347 = scalar_select %p346, %s19, 1
      %s348 = smul.addr %s347, 16
      %s349 = smul.addr %s348, 8
      %s350 = scalar_lea.vmem %s2, %s349
      %p351 = scmp.lt.s32.totalorder %s19, 1
      %s352 = scalar_select %p351, %s19, 1
      %s353 = smul.addr %s352, 16
      %s354 = smul.addr %s353, 8
      %s355 = scalar_lea.vmem %s3, %s354
      %p356 = scmp.lt.s32.totalorder %s19, 1
      %s357 = scalar_select %p356, %s19, 1
      %s358 = smul.addr %s357, 16
      %s359 = smul.addr %s358, 8
      %s360 = scalar_lea.vmem %s4, %s359
      %p361 = scmp.lt.s32.totalorder %s19, 1
      %s362 = scalar_select %p361, %s19, 1
      %s363 = smul.addr %s362, 16
      %s364 = smul.addr %s363, 8
      %s365 = scalar_lea.vmem %s5, %s364
      %p366 = scmp.lt.s32.totalorder %s19, 1
      %s367 = scalar_select %p366, %s19, 1
      %s368 = smul.addr %s367, 16
      %s369 = smul.addr %s368, 8
      %s370 = scalar_lea.vmem %s6, %s369
      %p371 = scmp.lt.s32.totalorder %s19, 1
      %s372 = scalar_select %p371, %s19, 1
      %s373 = smul.addr %s372, 16
      %s374 = smul.addr %s373, 8
      %s375 = scalar_lea.vmem %s7, %s374
      %v376 = vld [vmem:[%s340] sm:$0xff]
      %v377 = vld [vmem:[%s340 + $0x8] sm:$0xff]
      %v378 = vld [vmem:[%s340 + $0x10] sm:$0xff]
      %v379 = vld [vmem:[%s340 + $0x18] sm:$0xff]
      %v380 = vld [vmem:[%s340 + $0x20] sm:$0xff]
      %v381 = vld [vmem:[%s340 + $0x28] sm:$0xff]
      %v382 = vld [vmem:[%s340 + $0x30] sm:$0xff]
      %v383 = vld [vmem:[%s340 + $0x38] sm:$0xff]
      %v384 = vld [vmem:[%s340 + $0x40] sm:$0xff]
      %v385 = vld [vmem:[%s340 + $0x48] sm:$0xff]
      %v386 = vld [vmem:[%s340 + $0x50] sm:$0xff]
      %v387 = vld [vmem:[%s340 + $0x58] sm:$0xff]
      %v388 = vld [vmem:[%s340 + $0x60] sm:$0xff]
      %v389 = vld [vmem:[%s340 + $0x68] sm:$0xff]
      %v390 = vld [vmem:[%s340 + $0x70] sm:$0xff]
      %v391 = vld [vmem:[%s340 + $0x78] sm:$0xff]
      %v392 = vld [vmem:[%s345] sm:$0xff]
      %v393 = vld [vmem:[%s345 + $0x8] sm:$0xff]
      %v394 = vld [vmem:[%s345 + $0x10] sm:$0xff]
      %v395 = vld [vmem:[%s345 + $0x18] sm:$0xff]
      %v396 = vld [vmem:[%s345 + $0x20] sm:$0xff]
      %v397 = vld [vmem:[%s345 + $0x28] sm:$0xff]
      %v398 = vld [vmem:[%s345 + $0x30] sm:$0xff]
      %v399 = vld [vmem:[%s345 + $0x38] sm:$0xff]
      %v400 = vld [vmem:[%s345 + $0x40] sm:$0xff]
      %v401 = vld [vmem:[%s345 + $0x48] sm:$0xff]
      %v402 = vld [vmem:[%s345 + $0x50] sm:$0xff]
      %v403 = vld [vmem:[%s345 + $0x58] sm:$0xff]
      %v404 = vld [vmem:[%s345 + $0x60] sm:$0xff]
      %v405 = vld [vmem:[%s345 + $0x68] sm:$0xff]
      %v406 = vld [vmem:[%s345 + $0x70] sm:$0xff]
      %v407 = vld [vmem:[%s345 + $0x78] sm:$0xff]
      %v408 = vld [vmem:[%s350] sm:$0xff]
      %v409 = vld [vmem:[%s350 + $0x8] sm:$0xff]
      %v410 = vld [vmem:[%s350 + $0x10] sm:$0xff]
      %v411 = vld [vmem:[%s350 + $0x18] sm:$0xff]
      %v412 = vld [vmem:[%s350 + $0x20] sm:$0xff]
      %v413 = vld [vmem:[%s350 + $0x28] sm:$0xff]
      %v414 = vld [vmem:[%s350 + $0x30] sm:$0xff]
      %v415 = vld [vmem:[%s350 + $0x38] sm:$0xff]
      %v416 = vld [vmem:[%s350 + $0x40] sm:$0xff]
      %v417 = vld [vmem:[%s350 + $0x48] sm:$0xff]
      %v418 = vld [vmem:[%s350 + $0x50] sm:$0xff]
      %v419 = vld [vmem:[%s350 + $0x58] sm:$0xff]
      %v420 = vld [vmem:[%s350 + $0x60] sm:$0xff]
      %v421 = vld [vmem:[%s350 + $0x68] sm:$0xff]
      %v422 = vld [vmem:[%s350 + $0x70] sm:$0xff]
      %v423 = vld [vmem:[%s350 + $0x78] sm:$0xff]
      %v424 = vld [vmem:[%s355] sm:$0xff]
      %v425 = vld [vmem:[%s355 + $0x8] sm:$0xff]
      %v426 = vld [vmem:[%s355 + $0x10] sm:$0xff]
      %v427 = vld [vmem:[%s355 + $0x18] sm:$0xff]
      %v428 = vld [vmem:[%s355 + $0x20] sm:$0xff]
      %v429 = vld [vmem:[%s355 + $0x28] sm:$0xff]
      %v430 = vld [vmem:[%s355 + $0x30] sm:$0xff]
      %v431 = vld [vmem:[%s355 + $0x38] sm:$0xff]
      %v432 = vld [vmem:[%s355 + $0x40] sm:$0xff]
      %v433 = vld [vmem:[%s355 + $0x48] sm:$0xff]
      %v434 = vld [vmem:[%s355 + $0x50] sm:$0xff]
      %v435 = vld [vmem:[%s355 + $0x58] sm:$0xff]
      %v436 = vld [vmem:[%s355 + $0x60] sm:$0xff]
      %v437 = vld [vmem:[%s355 + $0x68] sm:$0xff]
      %v438 = vld [vmem:[%s355 + $0x70] sm:$0xff]
      %v439 = vld [vmem:[%s355 + $0x78] sm:$0xff]
      %v440 = vadd.f32 %v376, %v408
      %v441 = vadd.f32 %v377, %v409
      %v442 = vadd.f32 %v378, %v410
      %v443 = vadd.f32 %v379, %v411
      %v444 = vadd.f32 %v380, %v412
      %v445 = vadd.f32 %v381, %v413
      %v446 = vadd.f32 %v382, %v414
      %v447 = vadd.f32 %v383, %v415
      %v448 = vadd.f32 %v384, %v416
      %v449 = vadd.f32 %v385, %v417
      %v450 = vadd.f32 %v386, %v418
      %v451 = vadd.f32 %v387, %v419
      %v452 = vadd.f32 %v388, %v420
      %v453 = vadd.f32 %v389, %v421
      %v454 = vadd.f32 %v390, %v422
      %v455 = vadd.f32 %v391, %v423
      %v456 = vsub.f32 %v376, %v408
      %v457 = vsub.f32 %v377, %v409
      %v458 = vsub.f32 %v378, %v410
      %v459 = vsub.f32 %v379, %v411
      %v460 = vsub.f32 %v380, %v412
      %v461 = vsub.f32 %v381, %v413
      %v462 = vsub.f32 %v382, %v414
      %v463 = vsub.f32 %v383, %v415
      %v464 = vsub.f32 %v384, %v416
      %v465 = vsub.f32 %v385, %v417
      %v466 = vsub.f32 %v386, %v418
      %v467 = vsub.f32 %v387, %v419
      %v468 = vsub.f32 %v388, %v420
      %v469 = vsub.f32 %v389, %v421
      %v470 = vsub.f32 %v390, %v422
      %v471 = vsub.f32 %v391, %v423
      %v472 = vadd.f32 %v392, %v424
      %v473 = vadd.f32 %v393, %v425
      %v474 = vadd.f32 %v394, %v426
      %v475 = vadd.f32 %v395, %v427
      %v476 = vadd.f32 %v396, %v428
      %v477 = vadd.f32 %v397, %v429
      %v478 = vadd.f32 %v398, %v430
      %v479 = vadd.f32 %v399, %v431
      %v480 = vadd.f32 %v400, %v432
      %v481 = vadd.f32 %v401, %v433
      %v482 = vadd.f32 %v402, %v434
      %v483 = vadd.f32 %v403, %v435
      %v484 = vadd.f32 %v404, %v436
      %v485 = vadd.f32 %v405, %v437
      %v486 = vadd.f32 %v406, %v438
      %v487 = vadd.f32 %v407, %v439
      %v488 = vsub.f32 %v392, %v424
      %v489 = vsub.f32 %v393, %v425
      %v490 = vsub.f32 %v394, %v426
      %v491 = vsub.f32 %v395, %v427
      %v492 = vsub.f32 %v396, %v428
      %v493 = vsub.f32 %v397, %v429
      %v494 = vsub.f32 %v398, %v430
      %v495 = vsub.f32 %v399, %v431
      %v496 = vsub.f32 %v400, %v432
      %v497 = vsub.f32 %v401, %v433
      %v498 = vsub.f32 %v402, %v434
      %v499 = vsub.f32 %v403, %v435
      %v500 = vsub.f32 %v404, %v436
      %v501 = vsub.f32 %v405, %v437
      %v502 = vsub.f32 %v406, %v438
      %v503 = vsub.f32 %v407, %v439
      %v504 = vadd.f32 %v440, %v472
      %v505 = vadd.f32 %v441, %v473
      %v506 = vadd.f32 %v442, %v474
      %v507 = vadd.f32 %v443, %v475
      %v508 = vadd.f32 %v444, %v476
      %v509 = vadd.f32 %v445, %v477
      %v510 = vadd.f32 %v446, %v478
      %v511 = vadd.f32 %v447, %v479
      %v512 = vadd.f32 %v448, %v480
      %v513 = vadd.f32 %v449, %v481
      %v514 = vadd.f32 %v450, %v482
      %v515 = vadd.f32 %v451, %v483
      %v516 = vadd.f32 %v452, %v484
      %v517 = vadd.f32 %v453, %v485
      %v518 = vadd.f32 %v454, %v486
      %v519 = vadd.f32 %v455, %v487
      %v520 = vmul.f32 %v504, 0.5
      %v521 = vmul.f32 %v505, 0.5
      %v522 = vmul.f32 %v506, 0.5
      %v523 = vmul.f32 %v507, 0.5
      %v524 = vmul.f32 %v508, 0.5
      %v525 = vmul.f32 %v509, 0.5
      %v526 = vmul.f32 %v510, 0.5
      %v527 = vmul.f32 %v511, 0.5
      %v528 = vmul.f32 %v512, 0.5
      %v529 = vmul.f32 %v513, 0.5
      %v530 = vmul.f32 %v514, 0.5
      %v531 = vmul.f32 %v515, 0.5
      %v532 = vmul.f32 %v516, 0.5
      %v533 = vmul.f32 %v517, 0.5
      %v534 = vmul.f32 %v518, 0.5
      %v535 = vmul.f32 %v519, 0.5
      %v536 = vsub.f32 %v440, %v472
      %v537 = vsub.f32 %v441, %v473
      %v538 = vsub.f32 %v442, %v474
      %v539 = vsub.f32 %v443, %v475
      %v540 = vsub.f32 %v444, %v476
      %v541 = vsub.f32 %v445, %v477
      %v542 = vsub.f32 %v446, %v478
      %v543 = vsub.f32 %v447, %v479
      %v544 = vsub.f32 %v448, %v480
      %v545 = vsub.f32 %v449, %v481
      %v546 = vsub.f32 %v450, %v482
      %v547 = vsub.f32 %v451, %v483
      %v548 = vsub.f32 %v452, %v484
      %v549 = vsub.f32 %v453, %v485
      %v550 = vsub.f32 %v454, %v486
      %v551 = vsub.f32 %v455, %v487
      %v552 = vmul.f32 %v536, 0.5
      %v553 = vmul.f32 %v537, 0.5
      %v554 = vmul.f32 %v538, 0.5
      %v555 = vmul.f32 %v539, 0.5
      %v556 = vmul.f32 %v540, 0.5
      %v557 = vmul.f32 %v541, 0.5
      %v558 = vmul.f32 %v542, 0.5
      %v559 = vmul.f32 %v543, 0.5
      %v560 = vmul.f32 %v544, 0.5
      %v561 = vmul.f32 %v545, 0.5
      %v562 = vmul.f32 %v546, 0.5
      %v563 = vmul.f32 %v547, 0.5
      %v564 = vmul.f32 %v548, 0.5
      %v565 = vmul.f32 %v549, 0.5
      %v566 = vmul.f32 %v550, 0.5
      %v567 = vmul.f32 %v551, 0.5
      %v568 = vadd.f32 %v456, %v488
      %v569 = vadd.f32 %v457, %v489
      %v570 = vadd.f32 %v458, %v490
      %v571 = vadd.f32 %v459, %v491
      %v572 = vadd.f32 %v460, %v492
      %v573 = vadd.f32 %v461, %v493
      %v574 = vadd.f32 %v462, %v494
      %v575 = vadd.f32 %v463, %v495
      %v576 = vadd.f32 %v464, %v496
      %v577 = vadd.f32 %v465, %v497
      %v578 = vadd.f32 %v466, %v498
      %v579 = vadd.f32 %v467, %v499
      %v580 = vadd.f32 %v468, %v500
      %v581 = vadd.f32 %v469, %v501
      %v582 = vadd.f32 %v470, %v502
      %v583 = vadd.f32 %v471, %v503
      %v584 = vmul.f32 %v568, 0.5
      %v585 = vmul.f32 %v569, 0.5
      %v586 = vmul.f32 %v570, 0.5
      %v587 = vmul.f32 %v571, 0.5
      %v588 = vmul.f32 %v572, 0.5
      %v589 = vmul.f32 %v573, 0.5
      %v590 = vmul.f32 %v574, 0.5
      %v591 = vmul.f32 %v575, 0.5
      %v592 = vmul.f32 %v576, 0.5
      %v593 = vmul.f32 %v577, 0.5
      %v594 = vmul.f32 %v578, 0.5
      %v595 = vmul.f32 %v579, 0.5
      %v596 = vmul.f32 %v580, 0.5
      %v597 = vmul.f32 %v581, 0.5
      %v598 = vmul.f32 %v582, 0.5
      %v599 = vmul.f32 %v583, 0.5
      %v600 = vsub.f32 %v456, %v488
      %v601 = vsub.f32 %v457, %v489
      %v602 = vsub.f32 %v458, %v490
      %v603 = vsub.f32 %v459, %v491
      %v604 = vsub.f32 %v460, %v492
      %v605 = vsub.f32 %v461, %v493
      %v606 = vsub.f32 %v462, %v494
      %v607 = vsub.f32 %v463, %v495
      %v608 = vsub.f32 %v464, %v496
      %v609 = vsub.f32 %v465, %v497
      %v610 = vsub.f32 %v466, %v498
      %v611 = vsub.f32 %v467, %v499
      %v612 = vsub.f32 %v468, %v500
      %v613 = vsub.f32 %v469, %v501
      %v614 = vsub.f32 %v470, %v502
      %v615 = vsub.f32 %v471, %v503
      %v616 = vmul.f32 %v600, 0.5
      %v617 = vmul.f32 %v601, 0.5
      %v618 = vmul.f32 %v602, 0.5
      %v619 = vmul.f32 %v603, 0.5
      %v620 = vmul.f32 %v604, 0.5
      %v621 = vmul.f32 %v605, 0.5
      %v622 = vmul.f32 %v606, 0.5
      %v623 = vmul.f32 %v607, 0.5
      %v624 = vmul.f32 %v608, 0.5
      %v625 = vmul.f32 %v609, 0.5
      %v626 = vmul.f32 %v610, 0.5
      %v627 = vmul.f32 %v611, 0.5
      %v628 = vmul.f32 %v612, 0.5
      %v629 = vmul.f32 %v613, 0.5
      %v630 = vmul.f32 %v614, 0.5
      %v631 = vmul.f32 %v615, 0.5
      %632 = vst [vmem:[%s360] sm:$0xff] %v520
      %633 = vst [vmem:[%s360 + $0x8] sm:$0xff] %v521
      %634 = vst [vmem:[%s360 + $0x10] sm:$0xff] %v522
      %635 = vst [vmem:[%s360 + $0x18] sm:$0xff] %v523
      %636 = vst [vmem:[%s360 + $0x20] sm:$0xff] %v524
      %637 = vst [vmem:[%s360 + $0x28] sm:$0xff] %v525
      %638 = vst [vmem:[%s360 + $0x30] sm:$0xff] %v526
      %639 = vst [vmem:[%s360 + $0x38] sm:$0xff] %v527
      %640 = vst [vmem:[%s360 + $0x40] sm:$0xff] %v528
      %641 = vst [vmem:[%s360 + $0x48] sm:$0xff] %v529
      %642 = vst [vmem:[%s360 + $0x50] sm:$0xff] %v530
      %643 = vst [vmem:[%s360 + $0x58] sm:$0xff] %v531
      %644 = vst [vmem:[%s360 + $0x60] sm:$0xff] %v532
      %645 = vst [vmem:[%s360 + $0x68] sm:$0xff] %v533
      %646 = vst [vmem:[%s360 + $0x70] sm:$0xff] %v534
      %647 = vst [vmem:[%s360 + $0x78] sm:$0xff] %v535
      %648 = vst [vmem:[%s365] sm:$0xff] %v552
      %649 = vst [vmem:[%s365 + $0x8] sm:$0xff] %v553
      %650 = vst [vmem:[%s365 + $0x10] sm:$0xff] %v554
      %651 = vst [vmem:[%s365 + $0x18] sm:$0xff] %v555
      %652 = vst [vmem:[%s365 + $0x20] sm:$0xff] %v556
      %653 = vst [vmem:[%s365 + $0x28] sm:$0xff] %v557
      %654 = vst [vmem:[%s365 + $0x30] sm:$0xff] %v558
      %655 = vst [vmem:[%s365 + $0x38] sm:$0xff] %v559
      %656 = vst [vmem:[%s365 + $0x40] sm:$0xff] %v560
      %657 = vst [vmem:[%s365 + $0x48] sm:$0xff] %v561
      %658 = vst [vmem:[%s365 + $0x50] sm:$0xff] %v562
      %659 = vst [vmem:[%s365 + $0x58] sm:$0xff] %v563
      %660 = vst [vmem:[%s365 + $0x60] sm:$0xff] %v564
      %661 = vst [vmem:[%s365 + $0x68] sm:$0xff] %v565
      %662 = vst [vmem:[%s365 + $0x70] sm:$0xff] %v566
      %663 = vst [vmem:[%s365 + $0x78] sm:$0xff] %v567
      %664 = vst [vmem:[%s370] sm:$0xff] %v584
      %665 = vst [vmem:[%s370 + $0x8] sm:$0xff] %v585
      %666 = vst [vmem:[%s370 + $0x10] sm:$0xff] %v586
      %667 = vst [vmem:[%s370 + $0x18] sm:$0xff] %v587
      %668 = vst [vmem:[%s370 + $0x20] sm:$0xff] %v588
      %669 = vst [vmem:[%s370 + $0x28] sm:$0xff] %v589
      %670 = vst [vmem:[%s370 + $0x30] sm:$0xff] %v590
      %671 = vst [vmem:[%s370 + $0x38] sm:$0xff] %v591
      %672 = vst [vmem:[%s370 + $0x40] sm:$0xff] %v592
      %673 = vst [vmem:[%s370 + $0x48] sm:$0xff] %v593
      %674 = vst [vmem:[%s370 + $0x50] sm:$0xff] %v594
      %675 = vst [vmem:[%s370 + $0x58] sm:$0xff] %v595
      %676 = vst [vmem:[%s370 + $0x60] sm:$0xff] %v596
      %677 = vst [vmem:[%s370 + $0x68] sm:$0xff] %v597
      %678 = vst [vmem:[%s370 + $0x70] sm:$0xff] %v598
      %679 = vst [vmem:[%s370 + $0x78] sm:$0xff] %v599
      %680 = vst [vmem:[%s375] sm:$0xff] %v616
      %681 = vst [vmem:[%s375 + $0x8] sm:$0xff] %v617
      %682 = vst [vmem:[%s375 + $0x10] sm:$0xff] %v618
      %683 = vst [vmem:[%s375 + $0x18] sm:$0xff] %v619
      %684 = vst [vmem:[%s375 + $0x20] sm:$0xff] %v620
      %685 = vst [vmem:[%s375 + $0x28] sm:$0xff] %v621
      %686 = vst [vmem:[%s375 + $0x30] sm:$0xff] %v622
      %687 = vst [vmem:[%s375 + $0x38] sm:$0xff] %v623
      %688 = vst [vmem:[%s375 + $0x40] sm:$0xff] %v624
      %689 = vst [vmem:[%s375 + $0x48] sm:$0xff] %v625
      %690 = vst [vmem:[%s375 + $0x50] sm:$0xff] %v626
      %691 = vst [vmem:[%s375 + $0x58] sm:$0xff] %v627
      %692 = vst [vmem:[%s375 + $0x60] sm:$0xff] %v628
      %693 = vst [vmem:[%s375 + $0x68] sm:$0xff] %v629
      %694 = vst [vmem:[%s375 + $0x70] sm:$0xff] %v630
      %695 = vst [vmem:[%s375 + $0x78] sm:$0xff] %v631
      %p696 = scmp.lt.s32.totalorder %s19, 1
      %s697 = scalar_select %p696, %s19, 1
      %s698 = smul.addr %s697, 16
      %s699 = smul.addr %s698, 8
      %s700 = scalar_lea.vmem %s4, %s699
      %p701 = scmp.lt.s32.totalorder %s19, 1
      %s702 = scalar_select %p701, %s19, 1
      %s703 = smul.addr %s702, 16
      %s704 = smul.addr %s703, 8
      %s705 = scalar_lea.vmem %s5, %s704
      %p706 = scmp.lt.s32.totalorder %s19, 1
      %s707 = scalar_select %p706, %s19, 1
      %s708 = smul.addr %s707, 16
      %s709 = smul.addr %s708, 8
      %s710 = scalar_lea.vmem %s6, %s709
      %p711 = scmp.lt.s32.totalorder %s19, 1
      %s712 = scalar_select %p711, %s19, 1
      %s713 = smul.addr %s712, 16
      %s714 = smul.addr %s713, 8
      %s715 = scalar_lea.vmem %s7, %s714
      // Predicated region
      $region37: #{_idwt2d_unfused.1} parent=35 // pred_check
        %p716 = pneg %p141
      $region38: #{_idwt2d_unfused.1} parent=35 // pred_check_branch
        %718 = sbr.rel (%p716) target = $region40
      $region39: #{_idwt2d_unfused.1} parent=35 // pred_region
        _
      $region40: #{_idwt2d_unfused.1} parent=35 // pred_fallthru
        _
      // Predicated region
      $region41: #{_idwt2d_unfused.1} parent=35 // pred_check
        %p719 = pneg %p167
      $region42: #{_idwt2d_unfused.1} parent=35 // pred_check_branch
        %721 = sbr.rel (%p719) target = $region44
      $region43: #{_idwt2d_unfused.1} parent=35 // pred_region
        _
      $region44: #{_idwt2d_unfused.1} parent=35 // pred_fallthru
        _
      // Predicated region
      $region45: #{_idwt2d_unfused.1} parent=35 // pred_check
        %p722 = pneg %p193
      $region46: #{_idwt2d_unfused.1} parent=35 // pred_check_branch
        %724 = sbr.rel (%p722) target = $region48
      $region47: #{_idwt2d_unfused.1} parent=35 // pred_region
        _
      $region48: #{_idwt2d_unfused.1} parent=35 // pred_fallthru
        _
      // Predicated region
      $region49: #{_idwt2d_unfused.1} parent=35 // pred_check
        %p725 = pneg %p219
      $region50: #{_idwt2d_unfused.1} parent=35 // pred_check_branch
        %727 = sbr.rel (%p725) target = $region52
      $region51: #{_idwt2d_unfused.1} parent=35 // pred_region
        _
      $region52: #{_idwt2d_unfused.1} parent=35 // pred_fallthru
        _
    $region36: #{_idwt2d_unfused.1} parent=5 // pred_fallthru
      _
    %p728 = scmp.le.s32.totalorder 2, %s14
    // Predicated region
    $region53: #{_idwt2d_unfused.1} parent=5 // pred_check
      %p729 = pneg %p728
    $region54: #{_idwt2d_unfused.1} parent=5 // pred_check_branch
      %731 = sbr.rel (%p729) target = $region56
    $region55: #{_idwt2d_unfused.1} parent=5 // pred_region
      %s732 = ssub.s32 %s14, 2
      // Predicated region
      $region57: #{_idwt2d_unfused.1} parent=55 // pred_check
        %p733 = pneg %p147
      $region58: #{_idwt2d_unfused.1} parent=55 // pred_check_branch
        %735 = sbr.rel (%p733) target = $region60
      $region59: #{_idwt2d_unfused.1} parent=55 // pred_region
        %p736 = scmp.lt.s32.totalorder %s20, 1
        %s737 = scalar_select %p736, %s20, 1
        %s738 = smul.addr %s737, 16
        %s739 = smul.addr %s738, 8
        %s740 = scalar_lea.vmem %s4, %s739
      $region60: #{_idwt2d_unfused.1} parent=55 // pred_fallthru
        _
      // Predicated region
      $region61: #{_idwt2d_unfused.1} parent=55 // pred_check
        %p741 = pneg %p173
      $region62: #{_idwt2d_unfused.1} parent=55 // pred_check_branch
        %743 = sbr.rel (%p741) target = $region64
      $region63: #{_idwt2d_unfused.1} parent=55 // pred_region
        %p744 = scmp.lt.s32.totalorder %s20, 1
        %s745 = scalar_select %p744, %s20, 1
        %s746 = smul.addr %s745, 16
        %s747 = smul.addr %s746, 8
        %s748 = scalar_lea.vmem %s5, %s747
      $region64: #{_idwt2d_unfused.1} parent=55 // pred_fallthru
        _
      // Predicated region
      $region65: #{_idwt2d_unfused.1} parent=55 // pred_check
        %p749 = pneg %p199
      $region66: #{_idwt2d_unfused.1} parent=55 // pred_check_branch
        %751 = sbr.rel (%p749) target = $region68
      $region67: #{_idwt2d_unfused.1} parent=55 // pred_region
        %p752 = scmp.lt.s32.totalorder %s20, 1
        %s753 = scalar_select %p752, %s20, 1
        %s754 = smul.addr %s753, 16
        %s755 = smul.addr %s754, 8
        %s756 = scalar_lea.vmem %s6, %s755
      $region68: #{_idwt2d_unfused.1} parent=55 // pred_fallthru
        _
      // Predicated region
      $region69: #{_idwt2d_unfused.1} parent=55 // pred_check
        %p757 = pneg %p225
      $region70: #{_idwt2d_unfused.1} parent=55 // pred_check_branch
        %759 = sbr.rel (%p757) target = $region72
      $region71: #{_idwt2d_unfused.1} parent=55 // pred_region
        %p760 = scmp.lt.s32.totalorder %s20, 1
        %s761 = scalar_select %p760, %s20, 1
        %s762 = smul.addr %s761, 16
        %s763 = smul.addr %s762, 8
        %s764 = scalar_lea.vmem %s7, %s763
      $region72: #{_idwt2d_unfused.1} parent=55 // pred_fallthru
        _
    $region56: #{_idwt2d_unfused.1} parent=5 // pred_fallthru
      _
  $region6: #{_idwt2d_unfused.1} parent=0 // loop_footer
    %s18 = sadd.s32 1, %s14
  $region7: #{_idwt2d_unfused.1} parent=0 // loop_footer_branch
    %13 = sbr.rel target = $region3
  $region8: #{_idwt2d_unfused.1} parent=0 // loop_exit
    _

</llo_original>
